<compile_context>
chip_gen: v6e
topology: v6e:2x2x1
jax: 0.10.0
libtpu: 0.0.40
codegen_flags: <defaults>
</compile_context>

<pallas_src>
import functools

import jax
import jax.numpy as jnp
from jax import lax
from jax.experimental import pallas as pl
from jax.experimental.pallas import tpu as pltpu


_VMEM = pl.BlockSpec(memory_space=pltpu.MemorySpace.VMEM)


def _softplus(x):
    return jnp.logaddexp(x, 0.0)


# ---------------------------------------------------------------------------
# Kernel 1: batched input-side embeddings (off the recurrent critical path).
#   act_proj = actions @ W_sa_action + b_sa          -> (Tm1*B, H)
#   obs_proj = observations @ W_post_embed + b_po    -> (Tm1*B, Hs)
# ---------------------------------------------------------------------------
def seq_embed_kernel(act2_ref, obs2_ref,
                     w_sa_a_ref, b_sa_ref, w_po_e_ref, b_po_ref,
                     act_proj_ref, obs_proj_ref):
    act_proj_ref[...] = (
        jnp.dot(act2_ref[...], w_sa_a_ref[...],
                preferred_element_type=jnp.float32) + b_sa_ref[...])
    obs_proj_ref[...] = (
        jnp.dot(obs2_ref[...], w_po_e_ref[...],
                preferred_element_type=jnp.float32) + b_po_ref[...])


# ---------------------------------------------------------------------------
# Kernel 2: the serial GRU recurrence + posterior branch (the only compute
# that actually has a time dependence).  Outputs:
#   beliefs_ref : (Tm1, B, H)
#   post_ref    : (Tm1, B, 3S)  packed as [post_mean | post_std | post_state]
# ---------------------------------------------------------------------------
def recurrence_kernel(
        act_proj_ref, obs_proj_ref, qnoise_ref,
        prev_state_ref, prev_belief_ref,
        w_sa_s_ref, w_ih_ref, w_hh_ref,
        b_rz_ref, b_in_ref, b_hn_ref,
        w_po_b_ref, w_spo_ref, b_spo_ref,
        beliefs_ref, post_ref,
        *, belief_size, state_size, n_steps, min_std_dev, unroll):
    H = belief_size
    S = state_size
    B = prev_state_ref.shape[0]

    # Hoist only the recurrence-critical matmul weights (single VMEM read
    # each); everything else stays small.
    w_sa_s = w_sa_s_ref[...]
    w_ih = w_ih_ref[...]
    w_hh = w_hh_ref[...]
    w_po_b = w_po_b_ref[...]
    w_spo = w_spo_ref[...]

    # Pre-broadcast the (1, N) biases to (B, N) once, outside the loop.
    b_rz = jnp.broadcast_to(b_rz_ref[...], (B, 2 * H))
    b_in = jnp.broadcast_to(b_in_ref[...], (B, H))
    b_hn = jnp.broadcast_to(b_hn_ref[...], (B, H))
    b_spo = jnp.broadcast_to(b_spo_ref[...], (B, 2 * S))

    # Lane mask selecting the std half of a (B, 2S) mean|std vector.
    std_mask = lax.broadcasted_iota(jnp.int32, (B, 2 * S), 1) >= S

    def step(t, carry):
        belief, state = carry                     # (B, H), (B, S)

        # hidden = relu(state @ W_s + [action @ W_a + b_sa]  (hoisted))
        hidden = jax.nn.relu(
            jnp.dot(state, w_sa_s, preferred_element_type=jnp.float32)
            + act_proj_ref[t])

        # GRUCell (PyTorch gate order r, z, n); r and z share one fused
        # sigmoid over a 2H-wide slice with a pre-folded bias.
        gi = jnp.dot(hidden, w_ih, preferred_element_type=jnp.float32)
        gh = jnp.dot(belief, w_hh, preferred_element_type=jnp.float32)
        rz = jax.nn.sigmoid(gi[:, :2 * H] + gh[:, :2 * H] + b_rz)
        r = rz[:, :H]
        z = rz[:, H:]
        n = jnp.tanh(gi[:, 2 * H:] + b_in + r * (gh[:, 2 * H:] + b_hn))
        belief_new = (1.0 - z) * n + z * belief

        # Posterior branch (the only branch feeding the recurrence).
        hq = jax.nn.relu(
            jnp.dot(belief_new, w_po_b, preferred_element_type=jnp.float32)
            + obs_proj_ref[t])
        po = jnp.dot(hq, w_spo, preferred_element_type=jnp.float32) + b_spo
        meanstd = jnp.where(std_mask, _softplus(po) + min_std_dev, po)
        post_state = meanstd[:, :S] + meanstd[:, S:] * qnoise_ref[t]

        beliefs_ref[t] = belief_new                                   # no concat
        post_ref[t] = jnp.concatenate([meanstd, post_state], axis=-1)  # 2 pieces
        return belief_new, post_state

    lax.fori_loop(0, n_steps, step,
                  (prev_belief_ref[...], prev_state_ref[...]),
                  unroll=unroll)


# ---------------------------------------------------------------------------
# Kernel 3: prior head, batched over all (t, b) pairs at once.
#   out = [prior_mean | prior_std | prior_state]  -> (Tm1*B, 3S)
# ---------------------------------------------------------------------------
def prior_head_kernel(beliefs2_ref, pnoise2_ref,
                      w_pr_ref, b_pr_ref, w_sp_ref, b_sp_ref,
                      out_ref, *, state_size, min_std_dev):
    S = state_size
    hp = jax.nn.relu(
        jnp.dot(beliefs2_ref[...], w_pr_ref[...],
                preferred_element_type=jnp.float32) + b_pr_ref[...])
    pr = (jnp.dot(hp, w_sp_ref[...], preferred_element_type=jnp.float32)
          + b_sp_ref[...])
    std_mask = lax.broadcasted_iota(jnp.int32, pr.shape, 1) >= S
    meanstd = jnp.where(std_mask, _softplus(pr) + min_std_dev, pr)
    pstate = meanstd[:, :S] + meanstd[:, S:] * pnoise2_ref[...]
    out_ref[...] = jnp.concatenate([meanstd, pstate], axis=-1)


# ---------------------------------------------------------------------------
# Wrapper
# ---------------------------------------------------------------------------
def transition_model_pallas(params, prev_state, actions, prev_belief,
                            observations, prior_noise, post_noise,
                            min_std_dev=0.1):
    Tm1, B, A = actions.shape
    E = observations.shape[-1]
    S = prev_state.shape[1]
    H = prev_belief.shape[1]
    Hs = params["w_pr"].shape[1]
    N = Tm1 * B

    # ---- Kernel 1: batched input projections (M = Tm1*B). ----
    act_proj2, obs_proj2 = pl.pallas_call(
        seq_embed_kernel,
        out_shape=(jax.ShapeDtypeStruct((N, H), jnp.float32),
                   jax.ShapeDtypeStruct((N, Hs), jnp.float32)),
        in_specs=[_VMEM] * 6,
        out_specs=(_VMEM, _VMEM),
    )(actions.reshape(N, A), observations.reshape(N, E),
      params["w_sa_a"], params["b_sa"], params["w_po_e"], params["b_po"])
    act_proj = act_proj2.reshape(Tm1, B, H)
    obs_proj = obs_proj2.reshape(Tm1, B, Hs)

    # GRU biases: fold the r/z halves into one bias; keep the n-gate halves
    # separate (PyTorch: n = tanh(W_in x + b_in + r * (W_hn h + b_hn))).
    b_rz = params["b_ih"][:, :2 * H] + params["b_hh"][:, :2 * H]
    b_in = params["b_ih"][:, 2 * H:]
    b_hn = params["b_hh"][:, 2 * H:]

    # Full unroll only for tiny T; bounded unroll otherwise (vreg pressure).
    unroll = True if Tm1 <= 8 else 4

    rec_kernel = functools.partial(
        recurrence_kernel, belief_size=H, state_size=S,
        n_steps=Tm1, min_std_dev=min_std_dev, unroll=unroll)

    beliefs, post_slab = pl.pallas_call(
        rec_kernel,
        out_shape=(jax.ShapeDtypeStruct((Tm1, B, H), jnp.float32),
                   jax.ShapeDtypeStruct((Tm1, B, 3 * S), jnp.float32)),
        in_specs=[_VMEM] * 14,
        out_specs=(_VMEM, _VMEM),
    )(act_proj, obs_proj, post_noise, prev_state, prev_belief,
      params["w_sa_s"], params["w_ih"], params["w_hh"],
      b_rz, b_in, b_hn,
      params["w_po_b"], params["w_spo"], params["b_spo"])

    # ---- Kernel 3: prior head over all steps at once (M = Tm1*B). ----
    prior_slab2 = pl.pallas_call(
        functools.partial(prior_head_kernel, state_size=S,
                          min_std_dev=min_std_dev),
        out_shape=jax.ShapeDtypeStruct((N, 3 * S), jnp.float32),
        in_specs=[_VMEM] * 6,
        out_specs=_VMEM,
    )(beliefs.reshape(N, H), prior_noise.reshape(N, S),
      params["w_pr"], params["b_pr"], params["w_sp"], params["b_sp"])
    prior_slab = prior_slab2.reshape(Tm1, B, 3 * S)

    prior_means = prior_slab[:, :, 0:S]
    prior_stds = prior_slab[:, :, S:2 * S]
    prior_states = prior_slab[:, :, 2 * S:3 * S]
    post_means = post_slab[:, :, 0:S]
    post_stds = post_slab[:, :, S:2 * S]
    post_states = post_slab[:, :, 2 * S:3 * S]
    return [beliefs, prior_states, prior_means, prior_stds,
            post_states, post_means, post_stds]


# ---------------------------------------------------------------------------
# Pure-JAX reference mirroring the PyTorch forward (observations given).
# ---------------------------------------------------------------------------
def transition_model_ref(params, prev_state, actions, prev_belief,
                         observations, prior_noise, post_noise,
                         min_std_dev=0.1):
    Tm1 = actions.shape[0]
    H = prev_belief.shape[1]
    S = prev_state.shape[1]
    belief, state = prev_belief, prev_state
    cols = [[] for _ in range(7)]
    for t in range(Tm1):
        hidden = jax.nn.relu(state @ params["w_sa_s"]
                             + actions[t] @ params["w_sa_a"] + params["b_sa"])
        gi = hidden @ params["w_ih"] + params["b_ih"]
        gh = belief @ params["w_hh"] + params["b_hh"]
        r = jax.nn.sigmoid(gi[:, :H] + gh[:, :H])
        z = jax.nn.sigmoid(gi[:, H:2 * H] + gh[:, H:2 * H])
        n = jnp.tanh(gi[:, 2 * H:] + r * gh[:, 2 * H:])
        belief = (1.0 - z) * n + z * belief
        hp = jax.nn.relu(belief @ params["w_pr"] + params["b_pr"])
        pr = hp @ params["w_sp"] + params["b_sp"]
        pm, ps = pr[:, :S], jax.nn.softplus(pr[:, S:]) + min_std_dev
        pst = pm + ps * prior_noise[t]
        hq = jax.nn.relu(belief @ params["w_po_b"]
                         + observations[t] @ params["w_po_e"] + params["b_po"])
        po = hq @ params["w_spo"] + params["b_spo"]
        qm, qs = po[:, :S], jax.nn.softplus(po[:, S:]) + min_std_dev
        qst = qm + qs * post_noise[t]
        state = qst
        for c, v in zip(cols, [belief, pst, pm, ps, qst, qm, qs]):
            c.append(v)
    return [jnp.stack(c, axis=0) for c in cols]


def init_params(key, belief_size, state_size, action_size, hidden_size,
                embedding_size):
    """Deterministic PyTorch-Linear-style uniform init; weights stored as (in, out)."""
    def linear(k, fan_in, fan_out):
        bound = 1.0 / jnp.sqrt(fan_in)
        kw, kb = jax.random.split(k)
        w = jax.random.uniform(kw, (fan_in, fan_out), jnp.float32, -bound, bound)
        b = jax.random.uniform(kb, (1, fan_out), jnp.float32, -bound, bound)
        return w, b

    ks = jax.random.split(key, 8)
    w_sa, b_sa = linear(ks[0], state_size + action_size, belief_size)
    w_ih, b_ih = linear(ks[1], belief_size, 3 * belief_size)   # GRU input weights
    w_hh, b_hh = linear(ks[2], belief_size, 3 * belief_size)   # GRU hidden weights
    w_pr, b_pr = linear(ks[3], belief_size, hidden_size)
    w_sp, b_sp = linear(ks[4], hidden_size, 2 * state_size)
    w_po, b_po = linear(ks[5], belief_size + embedding_size, hidden_size)
    w_spo, b_spo = linear(ks[6], hidden_size, 2 * state_size)

    return dict(
        w_sa_s=w_sa[:state_size], w_sa_a=w_sa[state_size:], b_sa=b_sa,
        w_ih=w_ih, b_ih=b_ih, w_hh=w_hh, b_hh=b_hh,
        w_pr=w_pr, b_pr=b_pr, w_sp=w_sp, b_sp=b_sp,
        w_po_b=w_po[:belief_size], w_po_e=w_po[belief_size:], b_po=b_po,
        w_spo=w_spo, b_spo=b_spo,
    )


if __name__ == "__main__":
    belief_size, state_size, action_size = 32, 16, 8
    hidden_size, embedding_size = 32, 32
    B, Tm1 = 4, 6
    min_std_dev = 0.1

    key = jax.random.PRNGKey(0)
    kp, k1, k2, k3, k4, k5, k6 = jax.random.split(key, 7)

    params = init_params(kp, belief_size, state_size, action_size,
                         hidden_size, embedding_size)

    prev_state = jax.random.normal(k1, (B, state_size), jnp.float32)
    prev_belief = jax.random.normal(k2, (B, belief_size), jnp.float32)
    actions = jax.random.normal(k3, (Tm1, B, action_size), jnp.float32)
    observations = jax.random.normal(k4, (Tm1, B, embedding_size), jnp.float32)
    prior_noise = jax.random.normal(k5, (Tm1, B, state_size), jnp.float32)
    post_noise = jax.random.normal(k6, (Tm1, B, state_size), jnp.float32)

    outs = transition_model_pallas(params, prev_state, actions, prev_belief,
                                   observations, prior_noise, post_noise,
                                   min_std_dev)
    outs = jax.block_until_ready(outs)

    refs = transition_model_ref(params, prev_state, actions, prev_belief,
                                observations, prior_noise, post_noise,
                                min_std_dev)

    names = ["beliefs", "prior_states", "prior_means", "prior_std_devs",
             "posterior_states", "posterior_means", "posterior_std_devs"]
    for name, o, r in zip(names, outs, refs):
        assert o.shape == r.shape, (name, o.shape, r.shape)
        if not jnp.allclose(o, r, atol=2e-3, rtol=2e-3):
            raise AssertionError(f"mismatch in {name}: "
                                 f"max abs err {jnp.max(jnp.abs(o - r))}")

    print("KERNEL_OK")
</pallas_src>

<mosaic_0001>
module attributes {stable_mosaic.version = 11 : i64} {
  func.func @seq_embed_kernel(%arg0: memref<24x8xf32, #tpu.memory_space<vmem>>, %arg1: memref<24x32xf32, #tpu.memory_space<vmem>>, %arg2: memref<8x32xf32, #tpu.memory_space<vmem>>, %arg3: memref<1x32xf32, #tpu.memory_space<vmem>>, %arg4: memref<32x32xf32, #tpu.memory_space<vmem>>, %arg5: memref<1x32xf32, #tpu.memory_space<vmem>>, %arg6: memref<24x32xf32, #tpu.memory_space<vmem>>, %arg7: memref<24x32xf32, #tpu.memory_space<vmem>>) attributes {dimension_semantics = [], scalar_prefetch = 0 : i64, scratch_operands = 0 : i64, tpu.core_type = #tpu.core_type<tc>} {
    %c0 = arith.constant 0 : index
    %c0_0 = arith.constant 0 : index
    %0 = vector.load %arg0[%c0, %c0_0] : memref<24x8xf32, #tpu.memory_space<vmem>>, vector<24x8xf32>
    %c0_1 = arith.constant 0 : index
    %c0_2 = arith.constant 0 : index
    %1 = vector.load %arg2[%c0_1, %c0_2] : memref<8x32xf32, #tpu.memory_space<vmem>>, vector<8x32xf32>
    %cst = arith.constant dense<0.000000e+00> : vector<24x32xf32>
    %2 = tpu.matmul %0, %1, %cst {dimension_numbers = #tpu.dot_dimension_numbers<[1], [0], [0], [1], [0, 0, 1, 1], [], []>} : vector<24x8xf32>, vector<8x32xf32>, vector<24x32xf32> -> vector<24x32xf32>
    %c0_3 = arith.constant 0 : index
    %c0_4 = arith.constant 0 : index
    %3 = vector.load %arg3[%c0_3, %c0_4] : memref<1x32xf32, #tpu.memory_space<vmem>>, vector<1x32xf32>
    %4 = vector.broadcast %3 : vector<1x32xf32> to vector<24x32xf32>
    %5 = arith.addf %2, %4 : vector<24x32xf32>
    %c0_5 = arith.constant 0 : index
    %c0_6 = arith.constant 0 : index
    %6 = vector.load %arg6[%c0_5, %c0_6] : memref<24x32xf32, #tpu.memory_space<vmem>>, vector<24x32xf32>
    tpu.vector_store %arg6[%c0_5, %c0_6], %5 {strides = array<i32>} : memref<24x32xf32, #tpu.memory_space<vmem>>, vector<24x32xf32>,
    %c0_7 = arith.constant 0 : index
    %c0_8 = arith.constant 0 : index
    %7 = vector.load %arg1[%c0_7, %c0_8] : memref<24x32xf32, #tpu.memory_space<vmem>>, vector<24x32xf32>
    %c0_9 = arith.constant 0 : index
    %c0_10 = arith.constant 0 : index
    %8 = vector.load %arg4[%c0_9, %c0_10] : memref<32x32xf32, #tpu.memory_space<vmem>>, vector<32x32xf32>
    %cst_11 = arith.constant dense<0.000000e+00> : vector<24x32xf32>
    %9 = tpu.matmul %7, %8, %cst_11 {dimension_numbers = #tpu.dot_dimension_numbers<[1], [0], [0], [1], [0, 0, 1, 1], [], []>} : vector<24x32xf32>, vector<32x32xf32>, vector<24x32xf32> -> vector<24x32xf32>
    %c0_12 = arith.constant 0 : index
    %c0_13 = arith.constant 0 : index
    %10 = vector.load %arg5[%c0_12, %c0_13] : memref<1x32xf32, #tpu.memory_space<vmem>>, vector<1x32xf32>
    %11 = vector.broadcast %10 : vector<1x32xf32> to vector<24x32xf32>
    %12 = arith.addf %9, %11 : vector<24x32xf32>
    %c0_14 = arith.constant 0 : index
    %c0_15 = arith.constant 0 : index
    %13 = vector.load %arg7[%c0_14, %c0_15] : memref<24x32xf32, #tpu.memory_space<vmem>>, vector<24x32xf32>
    tpu.vector_store %arg7[%c0_14, %c0_15], %12 {strides = array<i32>} : memref<24x32xf32, #tpu.memory_space<vmem>>, vector<24x32xf32>,
    return
  }
}

</mosaic_0001>

<llo_original>
// kernel: tpu_custom_call.1
$region0: #{tpu_custom_call.1}
  #allocation0 [shape = 'u32[]', space=smem, size = 0x4, offset = 0x4, fixed_abs, tag = 'smem constant byte address 0x4 - core index']
  #allocation1 [shape = 'u32[144,128]{1,0:T(1,128)}', space=vmem, size = 0x12000, scoped, tag = 'internal scratch']
  %s0 = inlined_call_operand.vmem [shape: f32[24,8], index: 0, kind: input, shape index: {}]
  %s1 = inlined_call_operand.hbm [shape: f32[24,32], index: 1, kind: input, shape index: {}]
  %s2 = inlined_call_operand.hbm [shape: f32[8,32], index: 2, kind: input, shape index: {}]
  %s3 = inlined_call_operand.vmem [shape: f32[1,32], index: 3, kind: input, shape index: {}]
  %s4 = inlined_call_operand.vmem [shape: f32[32,32], index: 4, kind: input, shape index: {}]
  %s5 = inlined_call_operand.vmem [shape: f32[1,32], index: 5, kind: input, shape index: {}]
  %s6 = inlined_call_operand.hbm [shape: f32[24,32], index: 6, kind: output, shape index: {0}]
  %s7 = inlined_call_operand.hbm [shape: f32[24,32], index: 7, kind: output, shape index: {1}]
  %8 = xla_tuple %s6, %s7
  %s9 = sld [smem:[#allocation0]]
  $region50: #{tpu_custom_call.1} parent=0
    _
  %s11 = ssub.s32 1, %s9
  %s12 = scalar_select 0, %s11, %s9
  $region1: #{tpu_custom_call.1} parent=0
    #allocation2 [shape = 'u8[12288]{0}', space=vmem, size = 0x3000, scoped, tag = 'input window, operand 1, single buffered']
    #allocation3 [shape = 's32[1]{0}', space=sflag, size = 0x4, scoped, tag = 'scoped memory for tpu_custom_call.1']
    #allocation4 [shape = 's32[1]{0}', space=sflag, size = 0x4, scoped, tag = 'scoped memory for tpu_custom_call.1']
    #allocation5 [shape = 'u8[4096]{0}', space=vmem, size = 0x1000, scoped, tag = 'input window, operand 2, single buffered']
    #allocation6 [shape = 's32[1]{0}', space=sflag, size = 0x4, scoped, tag = 'scoped memory for tpu_custom_call.1']
    #allocation7 [shape = 'u8[12288]{0}', space=vmem, size = 0x3000, scoped, tag = 'output window, operand 0, single buffered']
    #allocation8 [shape = 'u8[12288]{0}', space=vmem, size = 0x3000, scoped, tag = 'output window, operand 1, single buffered']
    #allocation9 [shape = 's32[1]{0}', space=sflag, size = 0x4, scoped, tag = 'scoped memory for tpu_custom_call.1']
    %13 = vsyncpa [#allocation3], 0
    %14 = vsyncpa [#allocation6], 0
    %15 = vsyncpa [#allocation4], 0
    %16 = vsyncpa [#allocation9], 0
    // Predicated region
    $region2: #{tpu_custom_call.1} parent=1 // pred_check
      _
    $region3: #{tpu_custom_call.1} parent=1 // pred_check_branch
      %18 = sbr.rel (0) target = $region5
    $region4: #{tpu_custom_call.1} parent=1 // pred_region
      _
    $region5: #{tpu_custom_call.1} parent=1 // pred_fallthru
      _
    // Predicated region
    $region6: #{tpu_custom_call.1} parent=1 // pred_check
      _
    $region7: #{tpu_custom_call.1} parent=1 // pred_check_branch
      %20 = sbr.rel (0) target = $region9
    $region8: #{tpu_custom_call.1} parent=1 // pred_region
      %s22 = ssub.s32 384, 384
      %23 = vsyncadd [#allocation3], %s22
      %s24 = sshll.u32 [#allocation2], 4
      %s25 = int_to_ptr.vmem [resolvable:$true] %s24
      %30 = dma.hbm_to_vmem [thread:$0]  %s1, 384, %s25, [#allocation3], 128, 128, 8
    $region9: #{tpu_custom_call.1} parent=1 // pred_fallthru
      _
    // Predicated region
    $region10: #{tpu_custom_call.1} parent=1 // pred_check
      _
    $region11: #{tpu_custom_call.1} parent=1 // pred_check_branch
      %32 = sbr.rel (0) target = $region13
    $region12: #{tpu_custom_call.1} parent=1 // pred_region
      %s34 = ssub.s32 128, 128
      %35 = vsyncadd [#allocation6], %s34
      %s37 = sshll.u32 [#allocation5], 4
      %s38 = int_to_ptr.vmem [resolvable:$true] %s37
      %40 = dma.hbm_to_vmem [thread:$0]  %s2, 128, %s38, [#allocation6]
    $region13: #{tpu_custom_call.1} parent=1 // pred_fallthru
      _
    // Predicated region
    $region14: #{tpu_custom_call.1} parent=1 // pred_check
      _
    $region15: #{tpu_custom_call.1} parent=1 // pred_check_branch
      %42 = sbr.rel (0) target = $region17
    $region16: #{tpu_custom_call.1} parent=1 // pred_region
      _
    $region17: #{tpu_custom_call.1} parent=1 // pred_fallthru
      _
    // Predicated region
    $region18: #{tpu_custom_call.1} parent=1 // pred_check
      _
    $region19: #{tpu_custom_call.1} parent=1 // pred_check_branch
      %44 = sbr.rel (0) target = $region21
    $region20: #{tpu_custom_call.1} parent=1 // pred_region
      _
    $region21: #{tpu_custom_call.1} parent=1 // pred_fallthru
      _
    // Predicated region
    $region22: #{tpu_custom_call.1} parent=1 // pred_check
      _
    $region23: #{tpu_custom_call.1} parent=1 // pred_check_branch
      %46 = sbr.rel (0) target = $region25
    $region24: #{tpu_custom_call.1} parent=1 // pred_region
      _
    $region25: #{tpu_custom_call.1} parent=1 // pred_fallthru
      _
    // Predicated region
    $region26: #{tpu_custom_call.1} parent=1 // pred_check
      _
    $region27: #{tpu_custom_call.1} parent=1 // pred_check_branch
      %48 = sbr.rel (0) target = $region29
    $region28: #{tpu_custom_call.1} parent=1 // pred_region
      %49 = dma.done [#allocation3], 384
    $region29: #{tpu_custom_call.1} parent=1 // pred_fallthru
      _
    // Predicated region
    $region30: #{tpu_custom_call.1} parent=1 // pred_check
      _
    $region31: #{tpu_custom_call.1} parent=1 // pred_check_branch
      %51 = sbr.rel (0) target = $region33
    $region32: #{tpu_custom_call.1} parent=1 // pred_region
      %52 = dma.done [#allocation6], 128
    $region33: #{tpu_custom_call.1} parent=1 // pred_fallthru
      _
    %v53 = vld [vmem:[%s0] sm:$0xff]
    %v54 = vld [vmem:[%s0 + $0x8] sm:$0xff]
    %v55 = vld [vmem:[%s0 + $0x10] sm:$0xff]
    %v56 = vld [vmem:[#allocation5] sm:$0xff]
    %v57 = vld [vmem:[%s3] sm:$0x1]
    %v59 = vlaneseq
    %v60 = vshrl.u32 %v59, 7
    %v61 = vsub.s32 0, %v60
    %v62 = vrot.slane %v57, %v61
    %vm64 = vcmask 64512
    %v66 = vsel %vm64, %v53, 0
    %v69 = vsel %vm64, %v54, 0
    %v72 = vsel %vm64, %v55, 0
    %74 = vmatprep.subr.mxu0 0.0
    %75 = vmatpush1.msra.mxu0 0.0
    %76 = vmatprep.subr.mxu0 0.0
    %77 = vmatpush1.msra.mxu0 0.0
    %78 = vmatprep.subr.mxu0 0.0
    %79 = vmatpush1.msra.mxu0 0.0
    %80 = vmatprep.subr.mxu0 0.0
    %81 = vmatpush1.msra.mxu0 0.0
    %82 = vmatprep.subr.mxu0 0.0
    %83 = vmatpush1.msra.mxu0 0.0
    %84 = vmatprep.subr.mxu0 0.0
    %85 = vmatpush1.msra.mxu0 0.0
    %86 = vmatprep.subr.mxu0 0.0
    %87 = vmatpush1.msra.mxu0 0.0
    %88 = vmatprep.subr.mxu0 0.0
    %89 = vmatpush1.msra.mxu0 0.0
    %90 = vmatprep.subr.mxu0 0.0
    %91 = vmatpush1.msra.mxu0 0.0
    %92 = vmatprep.subr.mxu0 0.0
    %93 = vmatpush1.msra.mxu0 0.0
    %94 = vmatprep.subr.mxu0 0.0
    %95 = vmatpush1.msra.mxu0 0.0
    %96 = vmatprep.subr.mxu0 0.0
    %97 = vmatpush1.msra.mxu0 0.0
    %98 = vmatprep.subr.mxu0 0.0
    %99 = vmatpush1.msra.mxu0 0.0
    %100 = vmatprep.subr.mxu0 0.0
    %101 = vmatpush1.msra.mxu0 0.0
    %102 = vmatprep.subr.mxu0 0.0
    %103 = vmatpush1.msra.mxu0 0.0
    %104 = vmatprep.subr.mxu0 0.0
    %105 = vmatpush1.msra.mxu0 %v56
    %106 = vmatprep.subr.mxu0 0.0
    %107 = vmatpush2.msra.mxu0 0.0
    %108 = vmatprep.subr.mxu0 0.0
    %109 = vmatpush2.msra.mxu0 0.0
    %110 = vmatprep.subr.mxu0 0.0
    %111 = vmatpush2.msra.mxu0 0.0
    %112 = vmatprep.subr.mxu0 0.0
    %113 = vmatpush2.msra.mxu0 0.0
    %114 = vmatprep.subr.mxu0 0.0
    %115 = vmatpush2.msra.mxu0 0.0
    %116 = vmatprep.subr.mxu0 0.0
    %117 = vmatpush2.msra.mxu0 0.0
    %118 = vmatprep.subr.mxu0 0.0
    %119 = vmatpush2.msra.mxu0 0.0
    %120 = vmatprep.subr.mxu0 0.0
    %121 = vmatpush2.msra.mxu0 0.0
    %122 = vmatprep.subr.mxu0 0.0
    %123 = vmatpush2.msra.mxu0 0.0
    %124 = vmatprep.subr.mxu0 0.0
    %125 = vmatpush2.msra.mxu0 0.0
    %126 = vmatprep.subr.mxu0 0.0
    %127 = vmatpush2.msra.mxu0 0.0
    %128 = vmatprep.subr.mxu0 0.0
    %129 = vmatpush2.msra.mxu0 0.0
    %130 = vmatprep.subr.mxu0 0.0
    %131 = vmatpush2.msra.mxu0 0.0
    %132 = vmatprep.subr.mxu0 0.0
    %133 = vmatpush2.msra.mxu0 0.0
    %134 = vmatprep.subr.mxu0 0.0
    %135 = vmatpush2.msra.mxu0 0.0
    %136 = vmatprep.subr.mxu0 0.0
    %137 = vmatpush2.msra.mxu0 0.0
    %138 = vmatprep.mubr.f32.mxu0 0.0
    %139 = vmatmul.mubr.f32.gmra.mxu0 %v66
    %v140 = vpop.f32.mrf.mxu0
    %v141 = vadd.f32 %v62, %v140
    %v142 = vpop.f32.mrf.mxu0
    %143 = vmatprep.mubr.f32.mxu0 0.0
    %144 = vmatmul.mubr.f32.gmra.mxu0 %v69
    %v145 = vpop.f32.mrf.mxu0
    %v146 = vadd.f32 %v62, %v145
    %v147 = vpop.f32.mrf.mxu0
    %148 = vmatprep.mubr.f32.mxu0 0.0
    %149 = vmatmul.mubr.f32.gmra.mxu0 %v72
    %v150 = vpop.f32.mrf.mxu0
    %v151 = vadd.f32 %v62, %v150
    %v152 = vpop.f32.mrf.mxu0
    %153 = vdwg.mxu0
    %vm154 = vcmask 261120
    %155 = vst.msk [vmem:[#allocation7] sm:$0xff] %vm154, %v141
    %156 = vst.msk [vmem:[#allocation7 + $0x8] sm:$0xff] %vm154, %v146
    %157 = vst.msk [vmem:[#allocation7 + $0x10] sm:$0xff] %vm154, %v151
    %v158 = vld [vmem:[#allocation2] sm:$0xff]
    %v159 = vld [vmem:[#allocation2 + $0x8] sm:$0xff]
    %v160 = vld [vmem:[#allocation2 + $0x10] sm:$0xff]
    %v161 = vld [vmem:[%s4] sm:$0xff]
    %v162 = vld [vmem:[%s4 + $0x8] sm:$0xff]
    %v163 = vld [vmem:[%s4 + $0x10] sm:$0xff]
    %v164 = vld [vmem:[%s4 + $0x18] sm:$0xff]
    %v165 = vld [vmem:[%s5] sm:$0x1]
    %v167 = vlaneseq
    %v168 = vshrl.u32 %v167, 7
    %v169 = vsub.s32 0, %v168
    %v170 = vrot.slane %v165, %v169
    %v173 = vsel %vm154, %v158, 0
    %v176 = vsel %vm154, %v159, 0
    %v179 = vsel %vm154, %v160, 0
    %181 = vmatprep.subr.mxu0 0.0
    %182 = vmatpush1.msra.mxu0 0.0
    %183 = vmatprep.subr.mxu0 0.0
    %184 = vmatpush1.msra.mxu0 0.0
    %185 = vmatprep.subr.mxu0 0.0
    %186 = vmatpush1.msra.mxu0 0.0
    %187 = vmatprep.subr.mxu0 0.0
    %188 = vmatpush1.msra.mxu0 0.0
    %189 = vmatprep.subr.mxu0 0.0
    %190 = vmatpush1.msra.mxu0 0.0
    %191 = vmatprep.subr.mxu0 0.0
    %192 = vmatpush1.msra.mxu0 0.0
    %193 = vmatprep.subr.mxu0 0.0
    %194 = vmatpush1.msra.mxu0 0.0
    %195 = vmatprep.subr.mxu0 0.0
    %196 = vmatpush1.msra.mxu0 0.0
    %197 = vmatprep.subr.mxu0 0.0
    %198 = vmatpush1.msra.mxu0 0.0
    %199 = vmatprep.subr.mxu0 0.0
    %200 = vmatpush1.msra.mxu0 0.0
    %201 = vmatprep.subr.mxu0 0.0
    %202 = vmatpush1.msra.mxu0 0.0
    %203 = vmatprep.subr.mxu0 0.0
    %204 = vmatpush1.msra.mxu0 0.0
    %205 = vmatprep.subr.mxu0 0.0
    %206 = vmatpush1.msra.mxu0 %v164
    %207 = vmatprep.subr.mxu0 0.0
    %208 = vmatpush1.msra.mxu0 %v163
    %209 = vmatprep.subr.mxu0 0.0
    %210 = vmatpush1.msra.mxu0 %v162
    %211 = vmatprep.subr.mxu0 0.0
    %212 = vmatpush1.msra.mxu0 %v161
    %213 = vmatprep.subr.mxu0 0.0
    %214 = vmatpush2.msra.mxu0 0.0
    %215 = vmatprep.subr.mxu0 0.0
    %216 = vmatpush2.msra.mxu0 0.0
    %217 = vmatprep.subr.mxu0 0.0
    %218 = vmatpush2.msra.mxu0 0.0
    %219 = vmatprep.subr.mxu0 0.0
    %220 = vmatpush2.msra.mxu0 0.0
    %221 = vmatprep.subr.mxu0 0.0
    %222 = vmatpush2.msra.mxu0 0.0
    %223 = vmatprep.subr.mxu0 0.0
    %224 = vmatpush2.msra.mxu0 0.0
    %225 = vmatprep.subr.mxu0 0.0
    %226 = vmatpush2.msra.mxu0 0.0
    %227 = vmatprep.subr.mxu0 0.0
    %228 = vmatpush2.msra.mxu0 0.0
    %229 = vmatprep.subr.mxu0 0.0
    %230 = vmatpush2.msra.mxu0 0.0
    %231 = vmatprep.subr.mxu0 0.0
    %232 = vmatpush2.msra.mxu0 0.0
    %233 = vmatprep.subr.mxu0 0.0
    %234 = vmatpush2.msra.mxu0 0.0
    %235 = vmatprep.subr.mxu0 0.0
    %236 = vmatpush2.msra.mxu0 0.0
    %237 = vmatprep.subr.mxu0 0.0
    %238 = vmatpush2.msra.mxu0 0.0
    %239 = vmatprep.subr.mxu0 0.0
    %240 = vmatpush2.msra.mxu0 0.0
    %241 = vmatprep.subr.mxu0 0.0
    %242 = vmatpush2.msra.mxu0 0.0
    %243 = vmatprep.subr.mxu0 0.0
    %244 = vmatpush2.msra.mxu0 0.0
    %245 = vmatprep.mubr.f32.mxu0 0.0
    %246 = vmatmul.mubr.f32.gmra.mxu0 %v173
    %v247 = vpop.f32.mrf.mxu0
    %v248 = vadd.f32 %v170, %v247
    %v249 = vpop.f32.mrf.mxu0
    %250 = vmatprep.mubr.f32.mxu0 0.0
    %251 = vmatmul.mubr.f32.gmra.mxu0 %v176
    %v252 = vpop.f32.mrf.mxu0
    %v253 = vadd.f32 %v170, %v252
    %v254 = vpop.f32.mrf.mxu0
    %255 = vmatprep.mubr.f32.mxu0 0.0
    %256 = vmatmul.mubr.f32.gmra.mxu0 %v179
    %v257 = vpop.f32.mrf.mxu0
    %v258 = vadd.f32 %v170, %v257
    %v259 = vpop.f32.mrf.mxu0
    %260 = vdwg.mxu0
    %261 = vst.msk [vmem:[#allocation8] sm:$0xff] %vm154, %v248
    %262 = vst.msk [vmem:[#allocation8 + $0x8] sm:$0xff] %vm154, %v253
    %263 = vst.msk [vmem:[#allocation8 + $0x10] sm:$0xff] %vm154, %v258
    // Predicated region
    $region34: #{tpu_custom_call.1} parent=1 // pred_check
      _
    $region35: #{tpu_custom_call.1} parent=1 // pred_check_branch
      %265 = sbr.rel (0) target = $region37
    $region36: #{tpu_custom_call.1} parent=1 // pred_region
      %s267 = ssub.s32 384, 384
      %268 = vsyncadd [#allocation4], %s267
      %s269 = sshll.u32 [#allocation7], 4
      %s270 = int_to_ptr.vmem [resolvable:$true] %s269
      %275 = dma.vmem_to_hbm [thread:$0]  %s270, 384, %s6, [#allocation4], 128, 128, 8
    $region37: #{tpu_custom_call.1} parent=1 // pred_fallthru
      _
    // Predicated region
    $region38: #{tpu_custom_call.1} parent=1 // pred_check
      _
    $region39: #{tpu_custom_call.1} parent=1 // pred_check_branch
      %277 = sbr.rel (0) target = $region41
    $region40: #{tpu_custom_call.1} parent=1 // pred_region
      %s279 = ssub.s32 384, 384
      %280 = vsyncadd [#allocation9], %s279
      %s281 = sshll.u32 [#allocation8], 4
      %s282 = int_to_ptr.vmem [resolvable:$true] %s281
      %287 = dma.vmem_to_hbm [thread:$0]  %s282, 384, %s7, [#allocation9], 128, 128, 8
    $region41: #{tpu_custom_call.1} parent=1 // pred_fallthru
      _
    // Predicated region
    $region42: #{tpu_custom_call.1} parent=1 // pred_check
      _
    $region43: #{tpu_custom_call.1} parent=1 // pred_check_branch
      %289 = sbr.rel (0) target = $region45
    $region44: #{tpu_custom_call.1} parent=1 // pred_region
      %290 = dma.done [#allocation4], 384
    $region45: #{tpu_custom_call.1} parent=1 // pred_fallthru
      _
    // Predicated region
    $region46: #{tpu_custom_call.1} parent=1 // pred_check
      _
    $region47: #{tpu_custom_call.1} parent=1 // pred_check_branch
      %292 = sbr.rel (0) target = $region49
    $region48: #{tpu_custom_call.1} parent=1 // pred_region
      %293 = dma.done [#allocation9], 384
    $region49: #{tpu_custom_call.1} parent=1 // pred_fallthru
      _
    %294 = vsyncpa [#allocation3], 1
    %295 = vsyncpa [#allocation6], 1
    %296 = vsyncpa [#allocation4], 1
    %297 = vsyncpa [#allocation9], 1

</llo_original>
